<compile_context>
chip_gen: v5e
topology: v5e:2x2
jax: 0.10.0
libtpu: 0.0.40
codegen_flags: <defaults>
</compile_context>

<pallas_src>
import jax
import jax.numpy as jnp
import numpy as np
from jax.experimental import pallas as pl
from jax.experimental.pallas import tpu as pltpu


LANES = 128
# Minimum sublane granularity per element width (f32 -> 8, bf16 -> 16, i8 -> 32).
_SUBLANE_FOR_ITEMSIZE = {4: 8, 2: 16, 1: 32}
_MIB = 1024 * 1024


def _hw_params():
    """Generation-aware (tile_bytes, vmem_limit_bytes, multi_tensorcore)."""
    vmem_cap = 64 * _MIB  # conservative default (v7x-safe) if the query fails
    try:
        info = pltpu.get_tpu_info()
        vmem_cap = int(getattr(info, "vmem_capacity_bytes", vmem_cap))
    except Exception:
        pass
    if vmem_cap <= 96 * _MIB:
        # v7x-class: 64 MiB VMEM per TensorCore, 2 TensorCores per chip.
        # 3 operands x 2 pipeline buffers x 6 MiB = 36 MiB < 48 MiB scoped limit.
        return 6 * _MIB, 48 * _MIB, True
    # v5e / v6e: 128 MiB VMEM, single TensorCore -> bigger tiles, no forced split.
    return 14 * _MIB, 96 * _MIB, False


def gf_kernel(gates_ref, a_ref, b_ref, o_ref):
    # gates_ref: (2,) POST-sigmoid gates (f32), scalar-prefetched to SMEM once.
    out_dt = o_ref.dtype
    # Native-dtype compute keeps the body purely HBM-bound (no f32 round trip
    # for bf16 on v6e/v7x); only the two scalar gates get cast.
    cdt = out_dt if jnp.issubdtype(out_dt, jnp.floating) else jnp.float32
    w1 = gates_ref[0].astype(cdt)
    w2 = gates_ref[1].astype(cdt)
    res = w1 * a_ref[...].astype(cdt) + w2 * b_ref[...].astype(cdt)
    o_ref[...] = res.astype(out_dt)


def gf_forward(weight, A, B):
    """out = sigmoid(weight)[0] * A + sigmoid(weight)[1] * B (elementwise)."""
    assert A.shape == B.shape and A.dtype == B.dtype
    orig_shape = A.shape
    dtype = A.dtype
    total = int(np.prod(orig_shape)) if orig_shape else 1
    itemsize = jnp.dtype(dtype).itemsize
    sub = _SUBLANE_FOR_ITEMSIZE.get(itemsize, 8)

    # Hoist the gate sigmoids out of the per-step kernel body (computed once).
    gates = jax.nn.sigmoid(weight.astype(jnp.float32))

    rows_main = total // LANES
    n_main = rows_main * LANES

    a_flat = jnp.ravel(A)
    b_flat = jnp.ravel(B)

    if rows_main == 0:
        # Fewer than 128 elements: kernel launch not worthwhile.
        w1 = gates[0].astype(dtype)
        w2 = gates[1].astype(dtype)
        return (w1 * A + w2 * B).reshape(orig_shape)

    target_tile_bytes, vmem_limit_bytes, multi_tc = _hw_params()

    # Lane-dense (rows, 128) slab over the 128-aligned prefix (free reshape).
    a2 = a_flat[:n_main].reshape(rows_main, LANES)
    b2 = b_flat[:n_main].reshape(rows_main, LANES)

    # Multi-MiB tiles amortize the ~0.35us per-grid-step overhead while keeping
    # the double-buffered 3-operand footprint inside this generation's VMEM.
    max_br = max(sub, (target_tile_bytes // (LANES * itemsize)) // sub * sub)
    br = rows_main if rows_main <= max_br else max_br
    # Force >= 2 grid steps only on multi-TensorCore parts (v7x) so the
    # "parallel" axis can shard across both cores; on single-TC v5e/v6e a
    # one-step grid avoids pure pipeline-prologue overhead.
    if multi_tc and pl.cdiv(rows_main, br) == 1 and rows_main >= 2 * sub:
        br = (((rows_main + 1) // 2) + sub - 1) // sub * sub
    grid = (pl.cdiv(rows_main, br),)

    cost = pl.CostEstimate(
        flops=3 * n_main,                       # 2 muls + 1 add per element
        transcendentals=0,                      # sigmoid hoisted into the wrapper
        bytes_accessed=3 * n_main * itemsize + 2 * 4,
    )

    out2 = pl.pallas_call(
        gf_kernel,
        out_shape=jax.ShapeDtypeStruct((rows_main, LANES), dtype),
        grid_spec=pltpu.PrefetchScalarGridSpec(
            num_scalar_prefetch=1,                               # gates -> SMEM once
            grid=grid,
            in_specs=[
                pl.BlockSpec((br, LANES), lambda i, g: (i, 0)),  # A tile
                pl.BlockSpec((br, LANES), lambda i, g: (i, 0)),  # B tile
            ],
            out_specs=pl.BlockSpec((br, LANES), lambda i, g: (i, 0)),
        ),
        compiler_params=pltpu.CompilerParams(
            dimension_semantics=("parallel",),
            vmem_limit_bytes=vmem_limit_bytes,
        ),
        cost_estimate=cost,
    )(gates, a2, b2)

    out_flat = out2.reshape(-1)
    if n_main != total:
        # Ragged tail (< 128 elements): trivial jnp epilogue instead of a full
        # pad/slice pass over HBM.
        # TODO(synk): fold the tail into a masked final block in-kernel to also
        # avoid the concat write when total % 128 != 0.
        w1 = gates[0].astype(dtype)
        w2 = gates[1].astype(dtype)
        tail = w1 * a_flat[n_main:] + w2 * b_flat[n_main:]
        out_flat = jnp.concatenate([out_flat, tail])
    return out_flat.reshape(orig_shape)


if __name__ == "__main__":
    key = jax.random.PRNGKey(0)
    k_w, k_a, k_b = jax.random.split(key, 3)

    # Deterministic parameter init (stands in for torch.randn(2)).
    weight = jax.random.normal(k_w, (2,), dtype=jnp.float32)

    # Small NCHW-shaped inputs: batch=2, channels=4, spatial=16x16.
    A = jax.random.normal(k_a, (2, 4, 16, 16), dtype=jnp.float32)
    B = jax.random.normal(k_b, (2, 4, 16, 16), dtype=jnp.float32)

    out = jax.block_until_ready(gf_forward(weight, A, B))

    # Pure-JAX reference check.
    w1, w2 = jax.nn.sigmoid(weight)
    ref = w1 * A + w2 * B
    np.testing.assert_allclose(np.asarray(out), np.asarray(ref),
                               rtol=1e-6, atol=1e-6)

    print("KERNEL_OK")
</pallas_src>

<mosaic_0001>
module attributes {stable_mosaic.version = 11 : i64} {
  func.func @gf_kernel(%arg0: i32, %arg1: memref<2xf32, #tpu.memory_space<smem>>, %arg2: memref<8x128xf32, #tpu.memory_space<vmem>>, %arg3: memref<8x128xf32, #tpu.memory_space<vmem>>, %arg4: memref<8x128xf32, #tpu.memory_space<vmem>>) attributes {dimension_semantics = [#tpu.dimension_semantics<parallel>], iteration_bounds = array<i64: 2>, scalar_prefetch = 1 : i64, scratch_operands = 0 : i64, tpu.core_type = #tpu.core_type<tc>, window_params = [{transform_indices = @transform_0, window_bounds = array<i64: 8, 128>}, {transform_indices = @transform_1, window_bounds = array<i64: 8, 128>}, {transform_indices = @transform_2, window_bounds = array<i64: 8, 128>}]} {
    %c0 = arith.constant 0 : index
    %0 = memref.load %arg1[%c0] : memref<2xf32, #tpu.memory_space<smem>>
    %c1 = arith.constant 1 : index
    %1 = memref.load %arg1[%c1] : memref<2xf32, #tpu.memory_space<smem>>
    %c0_0 = arith.constant 0 : index
    %c0_1 = arith.constant 0 : index
    %2 = vector.load %arg2[%c0_0, %c0_1] : memref<8x128xf32, #tpu.memory_space<vmem>>, vector<8x128xf32>
    %3 = vector.broadcast %0 : f32 to vector<8x128xf32>
    %4 = arith.mulf %3, %2 : vector<8x128xf32>
    %c0_2 = arith.constant 0 : index
    %c0_3 = arith.constant 0 : index
    %5 = vector.load %arg3[%c0_2, %c0_3] : memref<8x128xf32, #tpu.memory_space<vmem>>, vector<8x128xf32>
    %6 = vector.broadcast %1 : f32 to vector<8x128xf32>
    %7 = arith.mulf %6, %5 : vector<8x128xf32>
    %8 = arith.addf %4, %7 : vector<8x128xf32>
    %c0_4 = arith.constant 0 : index
    %c0_5 = arith.constant 0 : index
    %9 = vector.load %arg4[%c0_4, %c0_5] : memref<8x128xf32, #tpu.memory_space<vmem>>, vector<8x128xf32>
    tpu.vector_store %arg4[%c0_4, %c0_5], %8 {strides = array<i32>} : memref<8x128xf32, #tpu.memory_space<vmem>>, vector<8x128xf32>,
    return
  }
  func.func @transform_0(%arg0: i32, %arg1: memref<2xf32, #tpu.memory_space<smem>>) -> (i32, i32) {
    %c0_i32 = arith.constant 0 : i32
    %c0_i32_0 = arith.constant 0 : i32
    return %arg0, %c0_i32 : i32, i32
  }
  func.func @transform_1(%arg0: i32, %arg1: memref<2xf32, #tpu.memory_space<smem>>) -> (i32, i32) {
    %c0_i32 = arith.constant 0 : i32
    %c0_i32_0 = arith.constant 0 : i32
    return %arg0, %c0_i32 : i32, i32
  }
  func.func @transform_2(%arg0: i32, %arg1: memref<2xf32, #tpu.memory_space<smem>>) -> (i32, i32) {
    %c0_i32 = arith.constant 0 : i32
    %c0_i32_0 = arith.constant 0 : i32
    return %arg0, %c0_i32 : i32, i32
  }
}

</mosaic_0001>

<llo_original>
// kernel: tpu_custom_call.1
$region0: #{tpu_custom_call.1}
  #allocation0 [shape = 'u32[]', space=smem, size = 0x4, offset = 0x4, fixed_abs, tag = 'smem constant byte address 0x4 - core index']
  #allocation1 [shape = 'u32[72,128]{1,0:T(1,128)}', space=vmem, size = 0x9000, scoped, tag = 'internal scratch']
  #allocation2 [shape = 's32[1]{0}', space=sflag, size = 0x4, scoped, tag = 'scoped memory for tpu_custom_call.1']
  #allocation3 [shape = 'u8[512]{0}', space=smem, size = 0x200, scoped, tag = 'prefetched SMEM operand 0']
  %s0 = inlined_call_operand.hbm [shape: f32[2], index: 0, kind: input, shape index: {}]
  %s1 = inlined_call_operand.hbm [shape: f32[16,128], index: 1, kind: input, shape index: {}]
  %s2 = inlined_call_operand.hbm [shape: f32[16,128], index: 2, kind: input, shape index: {}]
  %s3 = inlined_call_operand.hbm [shape: f32[16,128], index: 3, kind: output, shape index: {}]
  %s4 = sld [smem:[#allocation0]]
  $region49: #{tpu_custom_call.1} parent=0
    _
  %s6 = ssub.s32 1, %s4
  %s7 = scalar_select 0, %s6, %s4
  %s9 = sshll.u32 %s0, 4
  %s10 = int_to_ptr.hbm [resolvable:$true] %s9
  %12 = dma.hbm_to_smem %s10, 16, [#allocation3], [#allocation2]
  %14 = dma.done [#allocation2], 16
  %15 = sfence
  $region1: #{tpu_custom_call.1} parent=0
    #allocation4 [shape = 'u8[8192]{0}', space=vmem, size = 0x2000, scoped, tag = 'input window, operand 1']
    #allocation5 [shape = 's32[2]{0}', space=sflag, size = 0x8, scoped, tag = 'scoped memory for tpu_custom_call.1']
    #allocation6 [shape = 's32[2]{0}', space=sflag, size = 0x8, scoped, tag = 'scoped memory for tpu_custom_call.1']
    #allocation7 [shape = 'u8[8192]{0}', space=vmem, size = 0x2000, scoped, tag = 'input window, operand 2']
    #allocation8 [shape = 's32[2]{0}', space=sflag, size = 0x8, scoped, tag = 'scoped memory for tpu_custom_call.1']
    #allocation9 [shape = 'u8[8192]{0}', space=vmem, size = 0x2000, scoped, tag = 'output window, operand 0']
    %16 = vsyncpa [#allocation5], 0
    %s17 = scalar_lea.sflag [#allocation5], 1
    %18 = vsyncpa %s17, 0
    %19 = vsyncpa [#allocation8], 0
    %s20 = scalar_lea.sflag [#allocation8], 1
    %21 = vsyncpa %s20, 0
    %22 = vsyncpa [#allocation6], 0
    %s23 = scalar_lea.sflag [#allocation6], 1
    %24 = vsyncpa %s23, 0
    loop: start=0, step=1, limit=4
    $region2: #{tpu_custom_call.1} parent=1 // loop_pre_header
      _
    $region3: #{tpu_custom_call.1} parent=1 // loop_header
      %s26 = sphi 0, %s30
      %p27 = scmp.ge.s32.totalorder %s26, 4
      %s36 = sphi 0, %s38
      %s39 = sphi 0, %s36
      %s40 = sphi 0, %s39
      %s56 = sphi 0, %s40
      %s62 = sphi 0, %s64
      %s65 = sphi 0, %s62
      %s66 = sphi 0, %s65
      %s82 = sphi 0, %s66
      %s88 = sphi 0, %s90
      %s91 = sphi 0, %s88
      %s92 = sphi 0, %s91
      %s108 = sphi 0, %s92
    $region4: #{tpu_custom_call.1} parent=1 // loop_header_branch
      %29 = sbr.rel (%p27) target = $region8
    $region5: #{tpu_custom_call.1} parent=1 // loop_body
      %s31 = ssub.s32 %s26, 1
      %s32 = ssub.s32 %s26, 2
      %s33 = sadd.s32 %s26, 1
      %s34 = ssub.s32 %s26, %s33
      %p35 = scmp.eq.s32.totalorder %s34, 0
      %s37 = sadd.s32 %s36, 1
      %s38 = scalar_select %p35, %s36, %s37
      %p41 = pneg %p35
      %p42 = scmp.eq.s32.totalorder %s26, 1
      %p43 = por %p41, %p42
      %p44 = scmp.ne.s32.totalorder %s36, %s39
      %p45 = scmp.eq.s32.totalorder %s26, 0
      %p46 = por %p44, %p45
      %p47 = scmp.ne.s32.totalorder %s36, %s39
      %p48 = scmp.eq.s32.totalorder %s31, 1
      %p49 = por %p47, %p48
      %p50 = scmp.ne.s32.totalorder %s39, %s40
      %p51 = scmp.eq.s32.totalorder %s31, 0
      %p52 = por %p50, %p51
      %p53 = scmp.ne.s32.totalorder %s39, %s40
      %p54 = scmp.eq.s32.totalorder %s32, 1
      %p55 = por %p53, %p54
      %p57 = scmp.ne.s32.totalorder %s40, %s56
      %p58 = scmp.eq.s32.totalorder %s32, 0
      %p59 = por %p57, %p58
      %s60 = ssub.s32 %s26, %s33
      %p61 = scmp.eq.s32.totalorder %s60, 0
      %s63 = sadd.s32 %s62, 1
      %s64 = scalar_select %p61, %s62, %s63
      %p67 = pneg %p61
      %p68 = scmp.eq.s32.totalorder %s26, 1
      %p69 = por %p67, %p68
      %p70 = scmp.ne.s32.totalorder %s62, %s65
      %p71 = scmp.eq.s32.totalorder %s26, 0
      %p72 = por %p70, %p71
      %p73 = scmp.ne.s32.totalorder %s62, %s65
      %p74 = scmp.eq.s32.totalorder %s31, 1
      %p75 = por %p73, %p74
      %p76 = scmp.ne.s32.totalorder %s65, %s66
      %p77 = scmp.eq.s32.totalorder %s31, 0
      %p78 = por %p76, %p77
      %p79 = scmp.ne.s32.totalorder %s65, %s66
      %p80 = scmp.eq.s32.totalorder %s32, 1
      %p81 = por %p79, %p80
      %p83 = scmp.ne.s32.totalorder %s66, %s82
      %p84 = scmp.eq.s32.totalorder %s32, 0
      %p85 = por %p83, %p84
      %s86 = ssub.s32 %s26, %s33
      %p87 = scmp.eq.s32.totalorder %s86, 0
      %s89 = sadd.s32 %s88, 1
      %s90 = scalar_select %p87, %s88, %s89
      %p93 = pneg %p87
      %p94 = scmp.eq.s32.totalorder %s26, 1
      %p95 = por %p93, %p94
      %p96 = scmp.ne.s32.totalorder %s88, %s91
      %p97 = scmp.eq.s32.totalorder %s26, 0
      %p98 = por %p96, %p97
      %p99 = scmp.ne.s32.totalorder %s88, %s91
      %p100 = scmp.eq.s32.totalorder %s31, 1
      %p101 = por %p99, %p100
      %p102 = scmp.ne.s32.totalorder %s91, %s92
      %p103 = scmp.eq.s32.totalorder %s31, 0
      %p104 = por %p102, %p103
      %p105 = scmp.ne.s32.totalorder %s91, %s92
      %p106 = scmp.eq.s32.totalorder %s32, 1
      %p107 = por %p105, %p106
      %p109 = scmp.ne.s32.totalorder %s92, %s108
      %p110 = scmp.eq.s32.totalorder %s32, 0
      %p111 = por %p109, %p110
      %p112 = scmp.le.s32.totalorder 1, %s26
      %p113 = scmp.lt.s32.totalorder %s26, 3
      %p114 = pnand %p112, %p113
      %p115 = pneg %p114
      // Predicated region
      $region9: #{tpu_custom_call.1} parent=5 // pred_check
        _
      $region10: #{tpu_custom_call.1} parent=5 // pred_check_branch
        %117 = sbr.rel (%p114) target = $region12
      $region11: #{tpu_custom_call.1} parent=5 // pred_region
        %s118 = ssub.s32 %s26, 1
      $region12: #{tpu_custom_call.1} parent=5 // pred_fallthru
        _
      %p119 = scmp.lt.s32.totalorder %s26, 2
      // Predicated region
      $region13: #{tpu_custom_call.1} parent=5 // pred_check
        %p120 = pneg %p119
      $region14: #{tpu_custom_call.1} parent=5 // pred_check_branch
        %122 = sbr.rel (%p120) target = $region16
      $region15: #{tpu_custom_call.1} parent=5 // pred_region
        // Predicated region
        $region17: #{tpu_custom_call.1} parent=15 // pred_check
          %p123 = pneg %p46
        $region18: #{tpu_custom_call.1} parent=15 // pred_check_branch
          %125 = sbr.rel (%p123) target = $region20
        $region19: #{tpu_custom_call.1} parent=15 // pred_region
          %s126 = sand.u32 %s36, 1
          %s127 = scalar_lea.sflag [#allocation5], %s126
          %s128 = sand.u32 %s36, 1
          %s129 = smul.addr %s128, 8
          %s130 = scalar_lea.vmem [#allocation4], %s129
          %132 = vsyncadd %s127, 0
          %s133 = smul.addr %s26, 8
          %s134 = scalar_lea.hbm %s1, %s133
          %s136 = sshll.u32 %s134, 4
          %s137 = int_to_ptr.hbm [resolvable:$true] %s136
          %s138 = sshll.u32 %s130, 4
          %s139 = int_to_ptr.vmem [resolvable:$true] %s138
          %141 = dma.hbm_to_vmem [thread:$0]  %s137, 128, %s139, %s127
        $region20: #{tpu_custom_call.1} parent=15 // pred_fallthru
          _
        // Predicated region
        $region21: #{tpu_custom_call.1} parent=15 // pred_check
          %p142 = pneg %p72
        $region22: #{tpu_custom_call.1} parent=15 // pred_check_branch
          %144 = sbr.rel (%p142) target = $region24
        $region23: #{tpu_custom_call.1} parent=15 // pred_region
          %s145 = sand.u32 %s62, 1
          %s146 = scalar_lea.sflag [#allocation8], %s145
          %s147 = sand.u32 %s62, 1
          %s148 = smul.addr %s147, 8
          %s149 = scalar_lea.vmem [#allocation7], %s148
          %151 = vsyncadd %s146, 0
          %s152 = smul.addr %s26, 8
          %s153 = scalar_lea.hbm %s2, %s152
          %s155 = sshll.u32 %s153, 4
          %s156 = int_to_ptr.hbm [resolvable:$true] %s155
          %s157 = sshll.u32 %s149, 4
          %s158 = int_to_ptr.vmem [resolvable:$true] %s157
          %160 = dma.hbm_to_vmem [thread:$0]  %s156, 128, %s158, %s146
        $region24: #{tpu_custom_call.1} parent=15 // pred_fallthru
          _
      $region16: #{tpu_custom_call.1} parent=5 // pred_fallthru
        _
      %p161 = scmp.le.s32.totalorder 1, %s26
      %p162 = scmp.lt.s32.totalorder %s26, 3
      %p163 = pnand %p161, %p162
      %p164 = pneg %p163
      // Predicated region
      $region25: #{tpu_custom_call.1} parent=5 // pred_check
        _
      $region26: #{tpu_custom_call.1} parent=5 // pred_check_branch
        %166 = sbr.rel (%p163) target = $region28
      $region27: #{tpu_custom_call.1} parent=5 // pred_region
        %s167 = ssub.s32 %s26, 1
        %s168 = sand.u32 %s39, 1
        %s169 = scalar_lea.sflag [#allocation5], %s168
        %s170 = sand.u32 %s39, 1
        %s171 = smul.addr %s170, 8
        %s172 = scalar_lea.vmem [#allocation4], %s171
        // Predicated region
        $region29: #{tpu_custom_call.1} parent=27 // pred_check
          %p173 = pneg %p52
        $region30: #{tpu_custom_call.1} parent=27 // pred_check_branch
          %175 = sbr.rel (%p173) target = $region32
        $region31: #{tpu_custom_call.1} parent=27 // pred_region
          %177 = dma.done %s169, 128
        $region32: #{tpu_custom_call.1} parent=27 // pred_fallthru
          _
        %s178 = sand.u32 %s65, 1
        %s179 = scalar_lea.sflag [#allocation8], %s178
        %s180 = sand.u32 %s65, 1
        %s181 = smul.addr %s180, 8
        %s182 = scalar_lea.vmem [#allocation7], %s181
        // Predicated region
        $region33: #{tpu_custom_call.1} parent=27 // pred_check
          %p183 = pneg %p78
        $region34: #{tpu_custom_call.1} parent=27 // pred_check_branch
          %185 = sbr.rel (%p183) target = $region36
        $region35: #{tpu_custom_call.1} parent=27 // pred_region
          %187 = dma.done %s179, 128
        $region36: #{tpu_custom_call.1} parent=27 // pred_fallthru
          _
        %s188 = sand.u32 %s39, 1
        %s189 = scalar_lea.sflag [#allocation5], %s188
        %s190 = sand.u32 %s39, 1
        %s191 = smul.addr %s190, 8
        %s192 = scalar_lea.vmem [#allocation4], %s191
        %p193 = pneg %p52
        %p194 = pneg %p49
        %s195 = sand.u32 %s65, 1
        %s196 = scalar_lea.sflag [#allocation8], %s195
        %s197 = sand.u32 %s65, 1
        %s198 = smul.addr %s197, 8
        %s199 = scalar_lea.vmem [#allocation7], %s198
        %p200 = pneg %p78
        %p201 = pneg %p75
        %p202 = pneg %p104
        %p203 = pneg %p101
        %s204 = sand.u32 %s91, 1
        %s205 = scalar_lea.sflag [#allocation6], %s204
        %s206 = sand.u32 %s91, 1
        %s207 = smul.addr %s206, 8
        %s208 = scalar_lea.vmem [#allocation9], %s207
        %s209 = sld [smem:[#allocation3]]
        %s210 = sld [smem:[#allocation3 + $0x1]]
        %v211 = vld [vmem:[%s172] sm:$0xff]
        %v212 = vstv %s209
        %v213 = vmul.f32 %v212, %v211
        %v214 = vld [vmem:[%s182] sm:$0xff]
        %v215 = vstv %s210
        %v216 = vmul.f32 %v215, %v214
        %v217 = vadd.f32 %v213, %v216
        %218 = vst [vmem:[%s208] sm:$0xff] %v217
        %s219 = sand.u32 %s91, 1
        %s220 = scalar_lea.sflag [#allocation6], %s219
        %s221 = sand.u32 %s91, 1
        %s222 = smul.addr %s221, 8
        %s223 = scalar_lea.vmem [#allocation9], %s222
        // Predicated region
        $region37: #{tpu_custom_call.1} parent=27 // pred_check
          %p224 = pneg %p101
        $region38: #{tpu_custom_call.1} parent=27 // pred_check_branch
          %226 = sbr.rel (%p224) target = $region40
        $region39: #{tpu_custom_call.1} parent=27 // pred_region
          %228 = vsyncadd %s220, 0
          %s229 = smul.addr %s31, 8
          %s230 = scalar_lea.hbm %s3, %s229
          %s232 = sshll.u32 %s223, 4
          %s233 = int_to_ptr.vmem [resolvable:$true] %s232
          %s234 = sshll.u32 %s230, 4
          %s235 = int_to_ptr.hbm [resolvable:$true] %s234
          %237 = dma.vmem_to_hbm [thread:$0]  %s233, 128, %s235, %s220
        $region40: #{tpu_custom_call.1} parent=27 // pred_fallthru
          _
      $region28: #{tpu_custom_call.1} parent=5 // pred_fallthru
        _
      %p238 = scmp.le.s32.totalorder 2, %s26
      // Predicated region
      $region41: #{tpu_custom_call.1} parent=5 // pred_check
        %p239 = pneg %p238
      $region42: #{tpu_custom_call.1} parent=5 // pred_check_branch
        %241 = sbr.rel (%p239) target = $region44
      $region43: #{tpu_custom_call.1} parent=5 // pred_region
        %s242 = ssub.s32 %s26, 2
        // Predicated region
        $region45: #{tpu_custom_call.1} parent=43 // pred_check
          %p243 = pneg %p107
        $region46: #{tpu_custom_call.1} parent=43 // pred_check_branch
          %245 = sbr.rel (%p243) target = $region48
        $region47: #{tpu_custom_call.1} parent=43 // pred_region
          %s246 = sand.u32 %s92, 1
          %s247 = scalar_lea.sflag [#allocation6], %s246
          %s248 = sand.u32 %s92, 1
          %s249 = smul.addr %s248, 8
          %s250 = scalar_lea.vmem [#allocation9], %s249
          %252 = dma.done %s247, 128
        $region48: #{tpu_custom_call.1} parent=43 // pred_fallthru
          _
      $region44: #{tpu_custom_call.1} parent=5 // pred_fallthru
        _
    $region6: #{tpu_custom_call.1} parent=1 // loop_footer
      %s30 = sadd.s32 1, %s26
    $region7: #{tpu_custom_call.1} parent=1 // loop_footer_branch
      %25 = sbr.rel target = $region3
    $region8: #{tpu_custom_call.1} parent=1 // loop_exit
      _
    %253 = vsyncpa [#allocation5], 1
    %s254 = scalar_lea.sflag [#allocation5], 1
    %255 = vsyncpa %s254, 1
    %256 = vsyncpa [#allocation8], 1
    %s257 = scalar_lea.sflag [#allocation8], 1
    %258 = vsyncpa %s257, 1
    %259 = vsyncpa [#allocation6], 1
    %s260 = scalar_lea.sflag [#allocation6], 1
    %261 = vsyncpa %s260, 1

</llo_original>
